<compile_context>
chip_gen: v5e
topology: v5e:2x2
jax: 0.10.0
libtpu: 0.0.40
codegen_flags: <defaults>
</compile_context>

<pallas_src>
import functools

import jax
import jax.numpy as jnp
from jax.experimental import pallas as pl
from jax.experimental.pallas import tpu as pltpu

HIDDEN = 64     # true hidden width of layer 1
H_PAD = 128     # hidden padded to one full lane width (zeros in cols 64..127)


def _round_up(x, m):
    return ((x + m - 1) // m) * m


def _synergy_kernel(d1_ref, d2_ref, c_ref, w1a_ref, w1b_ref, w1c_ref,
                    b1_ref, w2_ref, b2_ref, out_ref):
    # ---- Layer 1: three K=D MXU matmuls accumulated in f32 (BatchNorm is
    # already folded into w1*/b1 wrapper-side), bias add + ReLU on the VPU.
    h = jnp.dot(d1_ref[...], w1a_ref[...], preferred_element_type=jnp.float32)
    h = h + jnp.dot(d2_ref[...], w1b_ref[...], preferred_element_type=jnp.float32)
    h = h + jnp.dot(c_ref[...], w1c_ref[...], preferred_element_type=jnp.float32)
    h = jnp.maximum(h + b1_ref[...], 0.0)                 # (tile_b, H_PAD) f32

    # Dropout(0.2): identity in eval mode.
    # TODO(synk): training-mode Dropout / batch-statistics BatchNorm omitted.

    # ---- Layer 2 (64 -> 1), lane-dense epilogue.
    # Fold the layer-2 weights with a VPU multiply, transpose so the batch sits
    # on lanes (f32 XLU transpose of a full-lane-width block), reduce over the
    # sublane (hidden) axis and store one dense (1, tile_b) row: no masked
    # partial stores, no 128x-padded output tile.
    g = h * w2_ref[...]                                   # (tile_b, H_PAD) f32
    y = jnp.sum(g.T, axis=0, keepdims=True) + b2_ref[...]  # (1, tile_b) f32

    # Exact sigmoid: kernel is DMA-bound, so the divide is free in wall-clock.
    out_ref[...] = 1.0 / (1.0 + jnp.exp(-y))


def _fold_bn(params):
    """Fold eval-mode BatchNorm1d into Linear1's weight/bias (f32, tiny)."""
    scale = params["bn_gamma"] / jnp.sqrt(params["bn_var"] + params["bn_eps"])
    shift = params["bn_beta"] - params["bn_mean"] * scale
    w1f = (params["w1"] * scale[None, :]).astype(jnp.float32)   # (3D, 64)
    b1f = (params["b1"] * scale + shift).astype(jnp.float32)    # (64,)
    return w1f, b1f


def drug_synergy_forward(drug1, drug2, cell, params, *, tile_b=8192):
    """drug1/drug2/cell: (B, D) float32 or bfloat16.  Returns (B, 1) float32.

    bf16 activations halve the dominant HBM input traffic; accumulation and the
    epilogue stay f32 either way.
    """
    B, D = drug1.shape
    in_dtype = drug1.dtype

    # --- Tiny wrapper-side parameter prep (weights only; no activation traffic).
    w1f, b1f = _fold_bn(params)

    def pad_hidden(a):  # zero-pad hidden 64 -> 128 (canonical lane width)
        return jnp.pad(a, ((0, 0), (0, H_PAD - a.shape[1])))

    w1a = pad_hidden(w1f[0 * D:1 * D]).astype(in_dtype)          # (D, 128)
    w1b = pad_hidden(w1f[1 * D:2 * D]).astype(in_dtype)          # (D, 128)
    w1c = pad_hidden(w1f[2 * D:3 * D]).astype(in_dtype)          # (D, 128)
    b1p = pad_hidden(b1f.reshape(1, HIDDEN))                     # (1, 128) f32
    w2p = pad_hidden(params["w2"].reshape(1, HIDDEN).astype(jnp.float32))
    b2 = params["b2"].reshape(1, 1).astype(jnp.float32)          # (1, 1)

    # --- Batch tiling: big tiles amortize the ~0.35us/step overhead; multiples
    # of 128 keep the output row lane-dense and cover bf16's 16-row packing.
    # VMEM @ tile_b=8192 (worst case f32): 3 x 8192x128x4B x 2 bufs = 24 MiB for
    # the (lane-padded) input buffers + ~10 MiB f32 intermediates + 0.5 MiB out
    # slab -> fits the 48 MiB scoped limit below (v7x has 64 MiB/TC physical).
    tile_b = max(128, min(_round_up(tile_b, 128), _round_up(B, 128)))
    num_tiles = pl.cdiv(B, tile_b)   # last block may be partial (Pallas pads)

    flops = 2 * B * (3 * D) * HIDDEN + 4 * B * HIDDEN
    bytes_accessed = (3 * B * D * drug1.dtype.itemsize      # activations in
                      + B * 4                               # sigmoid out
                      + 3 * D * H_PAD * w1a.dtype.itemsize  # resident weights
                      + 3 * H_PAD * 4)

    out = pl.pallas_call(
        _synergy_kernel,
        out_shape=jax.ShapeDtypeStruct((num_tiles, tile_b), jnp.float32),
        grid=(num_tiles,),
        in_specs=[
            pl.BlockSpec((tile_b, D), lambda i: (i, 0)),    # drug1 tile
            pl.BlockSpec((tile_b, D), lambda i: (i, 0)),    # drug2 tile
            pl.BlockSpec((tile_b, D), lambda i: (i, 0)),    # cell tile
            pl.BlockSpec((D, H_PAD), lambda i: (0, 0)),     # w1a (VMEM-resident)
            pl.BlockSpec((D, H_PAD), lambda i: (0, 0)),     # w1b (VMEM-resident)
            pl.BlockSpec((D, H_PAD), lambda i: (0, 0)),     # w1c (VMEM-resident)
            pl.BlockSpec((1, H_PAD), lambda i: (0, 0)),     # b1  (VMEM-resident)
            pl.BlockSpec((1, H_PAD), lambda i: (0, 0)),     # w2  (VMEM-resident)
            pl.BlockSpec((1, 1), lambda i: (0, 0)),         # b2  (VMEM-resident)
        ],
        out_specs=pl.BlockSpec((1, tile_b), lambda i: (i, 0)),  # lane-dense row
        compiler_params=pltpu.CompilerParams(
            dimension_semantics=("parallel",),       # megacore split on v7x
            vmem_limit_bytes=48 * 1024 * 1024,       # explicit scoped-VMEM budget
        ),
        cost_estimate=pl.CostEstimate(
            flops=flops, transcendentals=B, bytes_accessed=bytes_accessed),
    )(drug1, drug2, cell, w1a, w1b, w1c, b1p, w2p, b2)

    # (num_tiles, tile_b) slab -> (B, 1); the tail junk rows are dropped here.
    return out.reshape(-1)[:B].reshape(B, 1)


def init_params(key, input_dim):
    """Deterministic parameter init mirroring the PyTorch module's shapes."""
    k1, k2, k3, k4 = jax.random.split(key, 4)
    fan_in1 = input_dim * 3
    bound1 = 1.0 / jnp.sqrt(fan_in1)
    bound2 = 1.0 / jnp.sqrt(float(HIDDEN))
    return {
        "w1": jax.random.uniform(k1, (fan_in1, HIDDEN), jnp.float32, -bound1, bound1),
        "b1": jax.random.uniform(k2, (HIDDEN,), jnp.float32, -bound1, bound1),
        "bn_gamma": jnp.ones((HIDDEN,), jnp.float32),
        "bn_beta": jnp.zeros((HIDDEN,), jnp.float32),
        "bn_mean": jnp.zeros((HIDDEN,), jnp.float32),
        "bn_var": jnp.ones((HIDDEN,), jnp.float32),
        "bn_eps": jnp.float32(1e-5),
        "w2": jax.random.uniform(k3, (HIDDEN, 1), jnp.float32, -bound2, bound2),
        "b2": jax.random.uniform(k4, (1,), jnp.float32, -bound2, bound2),
    }


if __name__ == "__main__":
    key = jax.random.PRNGKey(0)
    kd1, kd2, kc, kp, kb1, kb2, kb3 = jax.random.split(key, 7)

    D = 16
    params = init_params(kp, D)
    # Non-trivial BatchNorm running stats so the folding path is really tested.
    params["bn_gamma"] = jax.random.uniform(kb1, (HIDDEN,), jnp.float32, 0.5, 1.5)
    params["bn_beta"] = 0.1 * jax.random.normal(kb2, (HIDDEN,), jnp.float32)
    params["bn_mean"] = 0.1 * jax.random.normal(kb3, (HIDDEN,), jnp.float32)
    params["bn_var"] = jnp.full((HIDDEN,), 0.8, jnp.float32)

    def reference(d1, d2, c, p):
        x = jnp.concatenate([d1, d2, c], axis=1).astype(jnp.float32)
        h = x @ p["w1"] + p["b1"]
        scale = p["bn_gamma"] / jnp.sqrt(p["bn_var"] + p["bn_eps"])
        h = jnp.maximum(h * scale + (p["bn_beta"] - p["bn_mean"] * scale), 0.0)
        return 1.0 / (1.0 + jnp.exp(-(h @ p["w2"] + p["b2"])))

    # ---- Check 1: float32 inputs, single tile. -----------------------------
    B = 256
    d1 = jax.random.normal(kd1, (B, D), jnp.float32)
    d2 = jax.random.normal(kd2, (B, D), jnp.float32)
    c = jax.random.normal(kc, (B, D), jnp.float32)
    out = jax.block_until_ready(jax.jit(drug_synergy_forward)(d1, d2, c, params))
    ref = reference(d1, d2, c, params)
    assert out.shape == (B, 1)
    # Tolerance covers XLA-vs-MXU f32 matmul precision-mode differences only;
    # the kernel itself uses an exact sigmoid.
    assert jnp.allclose(out, ref, atol=3e-3, rtol=3e-3), \
        float(jnp.max(jnp.abs(out - ref)))

    # ---- Check 2: bfloat16 inputs, multiple tiles with a ragged last tile. --
    B2 = 1000
    kd1b, kd2b, kcb = jax.random.split(jax.random.PRNGKey(1), 3)
    d1b = jax.random.normal(kd1b, (B2, D), jnp.float32).astype(jnp.bfloat16)
    d2b = jax.random.normal(kd2b, (B2, D), jnp.float32).astype(jnp.bfloat16)
    cb = jax.random.normal(kcb, (B2, D), jnp.float32).astype(jnp.bfloat16)
    fwd_bf16 = jax.jit(functools.partial(drug_synergy_forward, tile_b=256))
    out2 = jax.block_until_ready(fwd_bf16(d1b, d2b, cb, params))

    # Reference with the same bf16 quantization of x and the folded w1.
    w1f, b1f = _fold_bn(params)
    w1q = w1f.astype(jnp.bfloat16).astype(jnp.float32)
    x2 = jnp.concatenate([d1b, d2b, cb], axis=1).astype(jnp.float32)
    h2 = jnp.maximum(x2 @ w1q + b1f, 0.0)
    ref2 = 1.0 / (1.0 + jnp.exp(-(h2 @ params["w2"] + params["b2"])))
    assert out2.shape == (B2, 1)
    assert jnp.allclose(out2, ref2, atol=2e-3, rtol=2e-3), \
        float(jnp.max(jnp.abs(out2 - ref2)))

    print("KERNEL_OK")
</pallas_src>

<mosaic_0001>
module attributes {stable_mosaic.version = 11 : i64} {
  func.func @_synergy_kernel(%arg0: i32, %arg1: memref<256x16xf32, #tpu.memory_space<vmem>>, %arg2: memref<256x16xf32, #tpu.memory_space<vmem>>, %arg3: memref<256x16xf32, #tpu.memory_space<vmem>>, %arg4: memref<16x128xf32, #tpu.memory_space<vmem>>, %arg5: memref<16x128xf32, #tpu.memory_space<vmem>>, %arg6: memref<16x128xf32, #tpu.memory_space<vmem>>, %arg7: memref<1x128xf32, #tpu.memory_space<vmem>>, %arg8: memref<1x128xf32, #tpu.memory_space<vmem>>, %arg9: memref<1x1xf32, #tpu.memory_space<vmem>>, %arg10: memref<1x256xf32, #tpu.memory_space<vmem>>) attributes {dimension_semantics = [#tpu.dimension_semantics<parallel>], iteration_bounds = array<i64: 1>, scalar_prefetch = 0 : i64, scratch_operands = 0 : i64, tpu.core_type = #tpu.core_type<tc>, window_params = [{transform_indices = @transform_0, window_bounds = array<i64: 256, 16>}, {transform_indices = @transform_1, window_bounds = array<i64: 256, 16>}, {transform_indices = @transform_2, window_bounds = array<i64: 256, 16>}, {pipeline_mode = #tpu.pipeline_mode<synchronous>, transform_indices = @transform_3, window_bounds = array<i64: 16, 128>}, {pipeline_mode = #tpu.pipeline_mode<synchronous>, transform_indices = @transform_4, window_bounds = array<i64: 16, 128>}, {pipeline_mode = #tpu.pipeline_mode<synchronous>, transform_indices = @transform_5, window_bounds = array<i64: 16, 128>}, {pipeline_mode = #tpu.pipeline_mode<synchronous>, transform_indices = @transform_6, window_bounds = array<i64: 1, 128>}, {pipeline_mode = #tpu.pipeline_mode<synchronous>, transform_indices = @transform_7, window_bounds = array<i64: 1, 128>}, {pipeline_mode = #tpu.pipeline_mode<synchronous>, transform_indices = @transform_8, window_bounds = array<i64: 1, 1>}, {transform_indices = @transform_9, window_bounds = array<i64: 1, 256>}]} {
    %c0 = arith.constant 0 : index
    %c0_0 = arith.constant 0 : index
    %0 = vector.load %arg1[%c0, %c0_0] : memref<256x16xf32, #tpu.memory_space<vmem>>, vector<256x16xf32>
    %c0_1 = arith.constant 0 : index
    %c0_2 = arith.constant 0 : index
    %1 = vector.load %arg4[%c0_1, %c0_2] : memref<16x128xf32, #tpu.memory_space<vmem>>, vector<16x128xf32>
    %cst = arith.constant dense<0.000000e+00> : vector<256x128xf32>
    %2 = tpu.matmul %0, %1, %cst {dimension_numbers = #tpu.dot_dimension_numbers<[1], [0], [0], [1], [0, 0, 1, 1], [], []>} : vector<256x16xf32>, vector<16x128xf32>, vector<256x128xf32> -> vector<256x128xf32>
    %c0_3 = arith.constant 0 : index
    %c0_4 = arith.constant 0 : index
    %3 = vector.load %arg2[%c0_3, %c0_4] : memref<256x16xf32, #tpu.memory_space<vmem>>, vector<256x16xf32>
    %c0_5 = arith.constant 0 : index
    %c0_6 = arith.constant 0 : index
    %4 = vector.load %arg5[%c0_5, %c0_6] : memref<16x128xf32, #tpu.memory_space<vmem>>, vector<16x128xf32>
    %cst_7 = arith.constant dense<0.000000e+00> : vector<256x128xf32>
    %5 = tpu.matmul %3, %4, %cst_7 {dimension_numbers = #tpu.dot_dimension_numbers<[1], [0], [0], [1], [0, 0, 1, 1], [], []>} : vector<256x16xf32>, vector<16x128xf32>, vector<256x128xf32> -> vector<256x128xf32>
    %6 = arith.addf %2, %5 : vector<256x128xf32>
    %c0_8 = arith.constant 0 : index
    %c0_9 = arith.constant 0 : index
    %7 = vector.load %arg3[%c0_8, %c0_9] : memref<256x16xf32, #tpu.memory_space<vmem>>, vector<256x16xf32>
    %c0_10 = arith.constant 0 : index
    %c0_11 = arith.constant 0 : index
    %8 = vector.load %arg6[%c0_10, %c0_11] : memref<16x128xf32, #tpu.memory_space<vmem>>, vector<16x128xf32>
    %cst_12 = arith.constant dense<0.000000e+00> : vector<256x128xf32>
    %9 = tpu.matmul %7, %8, %cst_12 {dimension_numbers = #tpu.dot_dimension_numbers<[1], [0], [0], [1], [0, 0, 1, 1], [], []>} : vector<256x16xf32>, vector<16x128xf32>, vector<256x128xf32> -> vector<256x128xf32>
    %10 = arith.addf %6, %9 : vector<256x128xf32>
    %c0_13 = arith.constant 0 : index
    %c0_14 = arith.constant 0 : index
    %11 = vector.load %arg7[%c0_13, %c0_14] : memref<1x128xf32, #tpu.memory_space<vmem>>, vector<1x128xf32>
    %12 = vector.broadcast %11 : vector<1x128xf32> to vector<256x128xf32>
    %13 = arith.addf %10, %12 : vector<256x128xf32>
    %cst_15 = arith.constant 0.000000e+00 : f32
    %14 = vector.broadcast %cst_15 : f32 to vector<256x128xf32>
    %15 = arith.maximumf %13, %14 : vector<256x128xf32>
    %c0_16 = arith.constant 0 : index
    %c0_17 = arith.constant 0 : index
    %16 = vector.load %arg8[%c0_16, %c0_17] : memref<1x128xf32, #tpu.memory_space<vmem>>, vector<1x128xf32>
    %17 = vector.broadcast %16 : vector<1x128xf32> to vector<256x128xf32>
    %18 = arith.mulf %15, %17 : vector<256x128xf32>
    %19 = tpu.transpose %18, [1, 0] : vector<256x128xf32> -> vector<128x256xf32>
    %cst_18 = arith.constant dense<0.000000e+00> : vector<256xf32>
    %20 = vector.multi_reduction <add>, %19, %cst_18 [0] : vector<128x256xf32> to vector<256xf32>
    %21 = vector.shape_cast %20 : vector<256xf32> to vector<1x256xf32>
    %c0_19 = arith.constant 0 : index
    %c0_20 = arith.constant 0 : index
    %22 = vector.load %arg9[%c0_19, %c0_20] : memref<1x1xf32, #tpu.memory_space<vmem>>, vector<1x1xf32>
    %23 = vector.broadcast %22 : vector<1x1xf32> to vector<1x256xf32>
    %24 = arith.addf %21, %23 : vector<1x256xf32>
    %cst_21 = arith.constant 0.000000e+00 : f32
    %25 = vector.broadcast %cst_21 : f32 to vector<1x256xf32>
    %26 = arith.subf %25, %24 : vector<1x256xf32>
    %27 = math.exp %26 : vector<1x256xf32>
    %cst_22 = arith.constant 1.000000e+00 : f32
    %28 = vector.broadcast %cst_22 : f32 to vector<1x256xf32>
    %29 = arith.addf %28, %27 : vector<1x256xf32>
    %cst_23 = arith.constant 1.000000e+00 : f32
    %30 = vector.broadcast %cst_23 : f32 to vector<1x256xf32>
    %31 = arith.divf %30, %29 : vector<1x256xf32>
    %c0_24 = arith.constant 0 : index
    %c0_25 = arith.constant 0 : index
    %32 = vector.load %arg10[%c0_24, %c0_25] : memref<1x256xf32, #tpu.memory_space<vmem>>, vector<1x256xf32>
    tpu.vector_store %arg10[%c0_24, %c0_25], %31 {strides = array<i32>} : memref<1x256xf32, #tpu.memory_space<vmem>>, vector<1x256xf32>,
    return
  }
  func.func @transform_0(%arg0: i32) -> (i32, i32) {
    %c0_i32 = arith.constant 0 : i32
    %c0_i32_0 = arith.constant 0 : i32
    return %arg0, %c0_i32 : i32, i32
  }
  func.func @transform_1(%arg0: i32) -> (i32, i32) {
    %c0_i32 = arith.constant 0 : i32
    %c0_i32_0 = arith.constant 0 : i32
    return %arg0, %c0_i32 : i32, i32
  }
  func.func @transform_2(%arg0: i32) -> (i32, i32) {
    %c0_i32 = arith.constant 0 : i32
    %c0_i32_0 = arith.constant 0 : i32
    return %arg0, %c0_i32 : i32, i32
  }
  func.func @transform_3(%arg0: i32) -> (i32, i32) {
    %c0_i32 = arith.constant 0 : i32
    %c0_i32_0 = arith.constant 0 : i32
    %c0_i32_1 = arith.constant 0 : i32
    return %c0_i32, %c0_i32_0 : i32, i32
  }
  func.func @transform_4(%arg0: i32) -> (i32, i32) {
    %c0_i32 = arith.constant 0 : i32
    %c0_i32_0 = arith.constant 0 : i32
    %c0_i32_1 = arith.constant 0 : i32
    return %c0_i32, %c0_i32_0 : i32, i32
  }
  func.func @transform_5(%arg0: i32) -> (i32, i32) {
    %c0_i32 = arith.constant 0 : i32
    %c0_i32_0 = arith.constant 0 : i32
    %c0_i32_1 = arith.constant 0 : i32
    return %c0_i32, %c0_i32_0 : i32, i32
  }
  func.func @transform_6(%arg0: i32) -> (i32, i32) {
    %c0_i32 = arith.constant 0 : i32
    %c0_i32_0 = arith.constant 0 : i32
    %c0_i32_1 = arith.constant 0 : i32
    return %c0_i32, %c0_i32_0 : i32, i32
  }
  func.func @transform_7(%arg0: i32) -> (i32, i32) {
    %c0_i32 = arith.constant 0 : i32
    %c0_i32_0 = arith.constant 0 : i32
    %c0_i32_1 = arith.constant 0 : i32
    return %c0_i32, %c0_i32_0 : i32, i32
  }
  func.func @transform_8(%arg0: i32) -> (i32, i32) {
    %c0_i32 = arith.constant 0 : i32
    %c0_i32_0 = arith.constant 0 : i32
    %c0_i32_1 = arith.constant 0 : i32
    return %c0_i32, %c0_i32_0 : i32, i32
  }
  func.func @transform_9(%arg0: i32) -> (i32, i32) {
    %c0_i32 = arith.constant 0 : i32
    %c0_i32_0 = arith.constant 0 : i32
    return %arg0, %c0_i32 : i32, i32
  }
}

</mosaic_0001>

<llo_original>
// kernel: drug_synergy_forward.1
$region0: #{drug_synergy_forward.1}
  #allocation0 [shape = 'u32[]', space=smem, size = 0x4, offset = 0x4, fixed_abs, tag = 'smem constant byte address 0x4 - core index']
  #allocation1 [shape = 'u32[72,128]{1,0:T(1,128)}', space=vmem, size = 0x9000, scoped, tag = 'internal scratch']
  #allocation2 [shape = 'f32[1,1]{1,0:T(1,128)S(1)}', space=vmem, size = 0x200, scoped, tag = 'scoped memory for drug_synergy_forward.1']
  %s0 = inlined_call_operand.vmem [shape: f32[256,16], index: 0, kind: input, shape index: {}]
  %s1 = inlined_call_operand.vmem [shape: f32[256,16], index: 1, kind: input, shape index: {}]
  %s2 = inlined_call_operand.vmem [shape: f32[256,16], index: 2, kind: input, shape index: {}]
  %s3 = inlined_call_operand.vmem [shape: f32[16,128], index: 3, kind: input, shape index: {}]
  %s4 = inlined_call_operand.vmem [shape: f32[16,128], index: 4, kind: input, shape index: {}]
  %s5 = inlined_call_operand.vmem [shape: f32[16,128], index: 5, kind: input, shape index: {}]
  %s6 = inlined_call_operand.vmem [shape: f32[1,128], index: 6, kind: input, shape index: {}]
  %s7 = inlined_call_operand.vmem [shape: f32[1,128], index: 7, kind: input, shape index: {}]
  %s8 = inlined_call_operand.<no memory space> [shape: f32[1,1], index: 8, kind: input, shape index: {}]
  %s9 = inlined_call_operand.hbm [shape: f32[1,256], index: 9, kind: output, shape index: {}]
  %s10 = sld [smem:[#allocation0]]
  $region46: #{drug_synergy_forward.1} parent=0
    _
  %s12 = ssub.s32 1, %s10
  %s13 = scalar_select 0, %s12, %s10
  %v14 = vstv %s8
  %15 = vst [vmem:[#allocation2] sm:$0x1] %v14
  $region1: #{drug_synergy_forward.1} parent=0
    #allocation3 [shape = 'u8[1024]{0}', space=vmem, size = 0x400, scoped, tag = 'output window, operand 0, single buffered']
    #allocation4 [shape = 's32[1]{0}', space=sflag, size = 0x4, scoped, tag = 'scoped memory for drug_synergy_forward.1']
    %16 = vsyncpa [#allocation4], 0
    // Predicated region
    $region2: #{drug_synergy_forward.1} parent=1 // pred_check
      _
    $region3: #{drug_synergy_forward.1} parent=1 // pred_check_branch
      %18 = sbr.rel (0) target = $region5
    $region4: #{drug_synergy_forward.1} parent=1 // pred_region
      _
    $region5: #{drug_synergy_forward.1} parent=1 // pred_fallthru
      _
    // Predicated region
    $region6: #{drug_synergy_forward.1} parent=1 // pred_check
      _
    $region7: #{drug_synergy_forward.1} parent=1 // pred_check_branch
      %20 = sbr.rel (0) target = $region9
    $region8: #{drug_synergy_forward.1} parent=1 // pred_region
      _
    $region9: #{drug_synergy_forward.1} parent=1 // pred_fallthru
      _
    // Predicated region
    $region10: #{drug_synergy_forward.1} parent=1 // pred_check
      _
    $region11: #{drug_synergy_forward.1} parent=1 // pred_check_branch
      %22 = sbr.rel (0) target = $region13
    $region12: #{drug_synergy_forward.1} parent=1 // pred_region
      _
    $region13: #{drug_synergy_forward.1} parent=1 // pred_fallthru
      _
    // Predicated region
    $region14: #{drug_synergy_forward.1} parent=1 // pred_check
      _
    $region15: #{drug_synergy_forward.1} parent=1 // pred_check_branch
      %24 = sbr.rel (0) target = $region17
    $region16: #{drug_synergy_forward.1} parent=1 // pred_region
      _
    $region17: #{drug_synergy_forward.1} parent=1 // pred_fallthru
      _
    // Predicated region
    $region18: #{drug_synergy_forward.1} parent=1 // pred_check
      _
    $region19: #{drug_synergy_forward.1} parent=1 // pred_check_branch
      %26 = sbr.rel (0) target = $region21
    $region20: #{drug_synergy_forward.1} parent=1 // pred_region
      _
    $region21: #{drug_synergy_forward.1} parent=1 // pred_fallthru
      _
    // Predicated region
    $region22: #{drug_synergy_forward.1} parent=1 // pred_check
      _
    $region23: #{drug_synergy_forward.1} parent=1 // pred_check_branch
      %28 = sbr.rel (0) target = $region25
    $region24: #{drug_synergy_forward.1} parent=1 // pred_region
      _
    $region25: #{drug_synergy_forward.1} parent=1 // pred_fallthru
      _
    // Predicated region
    $region26: #{drug_synergy_forward.1} parent=1 // pred_check
      _
    $region27: #{drug_synergy_forward.1} parent=1 // pred_check_branch
      %30 = sbr.rel (0) target = $region29
    $region28: #{drug_synergy_forward.1} parent=1 // pred_region
      _
    $region29: #{drug_synergy_forward.1} parent=1 // pred_fallthru
      _
    // Predicated region
    $region30: #{drug_synergy_forward.1} parent=1 // pred_check
      _
    $region31: #{drug_synergy_forward.1} parent=1 // pred_check_branch
      %32 = sbr.rel (0) target = $region33
    $region32: #{drug_synergy_forward.1} parent=1 // pred_region
      _
    $region33: #{drug_synergy_forward.1} parent=1 // pred_fallthru
      _
    // Predicated region
    $region34: #{drug_synergy_forward.1} parent=1 // pred_check
      _
    $region35: #{drug_synergy_forward.1} parent=1 // pred_check_branch
      %34 = sbr.rel (0) target = $region37
    $region36: #{drug_synergy_forward.1} parent=1 // pred_region
      _
    $region37: #{drug_synergy_forward.1} parent=1 // pred_fallthru
      _
    %v35 = vld [vmem:[%s0] sm:$0xff]
    %v36 = vld [vmem:[%s0 + $0x8] sm:$0xff]
    %v37 = vld [vmem:[%s0 + $0x10] sm:$0xff]
    %v38 = vld [vmem:[%s0 + $0x18] sm:$0xff]
    %v39 = vld [vmem:[%s0 + $0x20] sm:$0xff]
    %v40 = vld [vmem:[%s0 + $0x28] sm:$0xff]
    %v41 = vld [vmem:[%s0 + $0x30] sm:$0xff]
    %v42 = vld [vmem:[%s0 + $0x38] sm:$0xff]
    %v43 = vld [vmem:[%s0 + $0x40] sm:$0xff]
    %v44 = vld [vmem:[%s0 + $0x48] sm:$0xff]
    %v45 = vld [vmem:[%s0 + $0x50] sm:$0xff]
    %v46 = vld [vmem:[%s0 + $0x58] sm:$0xff]
    %v47 = vld [vmem:[%s0 + $0x60] sm:$0xff]
    %v48 = vld [vmem:[%s0 + $0x68] sm:$0xff]
    %v49 = vld [vmem:[%s0 + $0x70] sm:$0xff]
    %v50 = vld [vmem:[%s0 + $0x78] sm:$0xff]
    %v51 = vld [vmem:[%s0 + $0x80] sm:$0xff]
    %v52 = vld [vmem:[%s0 + $0x88] sm:$0xff]
    %v53 = vld [vmem:[%s0 + $0x90] sm:$0xff]
    %v54 = vld [vmem:[%s0 + $0x98] sm:$0xff]
    %v55 = vld [vmem:[%s0 + $0xa0] sm:$0xff]
    %v56 = vld [vmem:[%s0 + $0xa8] sm:$0xff]
    %v57 = vld [vmem:[%s0 + $0xb0] sm:$0xff]
    %v58 = vld [vmem:[%s0 + $0xb8] sm:$0xff]
    %v59 = vld [vmem:[%s0 + $0xc0] sm:$0xff]
    %v60 = vld [vmem:[%s0 + $0xc8] sm:$0xff]
    %v61 = vld [vmem:[%s0 + $0xd0] sm:$0xff]
    %v62 = vld [vmem:[%s0 + $0xd8] sm:$0xff]
    %v63 = vld [vmem:[%s0 + $0xe0] sm:$0xff]
    %v64 = vld [vmem:[%s0 + $0xe8] sm:$0xff]
    %v65 = vld [vmem:[%s0 + $0xf0] sm:$0xff]
    %v66 = vld [vmem:[%s0 + $0xf8] sm:$0xff]
    %v67 = vld [vmem:[%s3] sm:$0xff]
    %v68 = vld [vmem:[%s3 + $0x8] sm:$0xff]
    %v69 = vld [vmem:[%s1] sm:$0xff]
    %v70 = vld [vmem:[%s1 + $0x8] sm:$0xff]
    %v71 = vld [vmem:[%s1 + $0x10] sm:$0xff]
    %v72 = vld [vmem:[%s1 + $0x18] sm:$0xff]
    %v73 = vld [vmem:[%s1 + $0x20] sm:$0xff]
    %v74 = vld [vmem:[%s1 + $0x28] sm:$0xff]
    %v75 = vld [vmem:[%s1 + $0x30] sm:$0xff]
    %v76 = vld [vmem:[%s1 + $0x38] sm:$0xff]
    %v77 = vld [vmem:[%s1 + $0x40] sm:$0xff]
    %v78 = vld [vmem:[%s1 + $0x48] sm:$0xff]
    %v79 = vld [vmem:[%s1 + $0x50] sm:$0xff]
    %v80 = vld [vmem:[%s1 + $0x58] sm:$0xff]
    %v81 = vld [vmem:[%s1 + $0x60] sm:$0xff]
    %v82 = vld [vmem:[%s1 + $0x68] sm:$0xff]
    %v83 = vld [vmem:[%s1 + $0x70] sm:$0xff]
    %v84 = vld [vmem:[%s1 + $0x78] sm:$0xff]
    %v85 = vld [vmem:[%s1 + $0x80] sm:$0xff]
    %v86 = vld [vmem:[%s1 + $0x88] sm:$0xff]
    %v87 = vld [vmem:[%s1 + $0x90] sm:$0xff]
    %v88 = vld [vmem:[%s1 + $0x98] sm:$0xff]
    %v89 = vld [vmem:[%s1 + $0xa0] sm:$0xff]
    %v90 = vld [vmem:[%s1 + $0xa8] sm:$0xff]
    %v91 = vld [vmem:[%s1 + $0xb0] sm:$0xff]
    %v92 = vld [vmem:[%s1 + $0xb8] sm:$0xff]
    %v93 = vld [vmem:[%s1 + $0xc0] sm:$0xff]
    %v94 = vld [vmem:[%s1 + $0xc8] sm:$0xff]
    %v95 = vld [vmem:[%s1 + $0xd0] sm:$0xff]
    %v96 = vld [vmem:[%s1 + $0xd8] sm:$0xff]
    %v97 = vld [vmem:[%s1 + $0xe0] sm:$0xff]
    %v98 = vld [vmem:[%s1 + $0xe8] sm:$0xff]
    %v99 = vld [vmem:[%s1 + $0xf0] sm:$0xff]
    %v100 = vld [vmem:[%s1 + $0xf8] sm:$0xff]
    %v101 = vld [vmem:[%s4] sm:$0xff]
    %v102 = vld [vmem:[%s4 + $0x8] sm:$0xff]
    %vm103 = vcmask 130048
    %v105 = vsel %vm103, %v69, 0
    %v108 = vsel %vm103, %v70, 0
    %v111 = vsel %vm103, %v71, 0
    %v114 = vsel %vm103, %v72, 0
    %v117 = vsel %vm103, %v73, 0
    %v120 = vsel %vm103, %v74, 0
    %v123 = vsel %vm103, %v75, 0
    %v126 = vsel %vm103, %v76, 0
    %v129 = vsel %vm103, %v77, 0
    %v132 = vsel %vm103, %v78, 0
    %v135 = vsel %vm103, %v79, 0
    %v138 = vsel %vm103, %v80, 0
    %v141 = vsel %vm103, %v81, 0
    %v144 = vsel %vm103, %v82, 0
    %v147 = vsel %vm103, %v83, 0
    %v150 = vsel %vm103, %v84, 0
    %v153 = vsel %vm103, %v85, 0
    %v156 = vsel %vm103, %v86, 0
    %v159 = vsel %vm103, %v87, 0
    %v162 = vsel %vm103, %v88, 0
    %v165 = vsel %vm103, %v89, 0
    %v168 = vsel %vm103, %v90, 0
    %v171 = vsel %vm103, %v91, 0
    %v174 = vsel %vm103, %v92, 0
    %v177 = vsel %vm103, %v93, 0
    %v180 = vsel %vm103, %v94, 0
    %v183 = vsel %vm103, %v95, 0
    %v186 = vsel %vm103, %v96, 0
    %v189 = vsel %vm103, %v97, 0
    %v192 = vsel %vm103, %v98, 0
    %v195 = vsel %vm103, %v99, 0
    %v198 = vsel %vm103, %v100, 0
    %200 = vmatpush.msra.mxu0 0.0
    %201 = vmatpush.msra.mxu0 0.0
    %202 = vmatpush.msra.mxu0 0.0
    %203 = vmatpush.msra.mxu0 0.0
    %204 = vmatpush.msra.mxu0 0.0
    %205 = vmatpush.msra.mxu0 0.0
    %206 = vmatpush.msra.mxu0 0.0
    %207 = vmatpush.msra.mxu0 0.0
    %208 = vmatpush.msra.mxu0 0.0
    %209 = vmatpush.msra.mxu0 0.0
    %210 = vmatpush.msra.mxu0 0.0
    %211 = vmatpush.msra.mxu0 0.0
    %212 = vmatpush.msra.mxu0 0.0
    %213 = vmatpush.msra.mxu0 0.0
    %214 = vmatpush.msra.mxu0 %v102
    %215 = vmatpush.msra.mxu0 %v101
    %216 = vmatmul.f32.gmra.mxu0 %v105
    %v217 = vpop.f32.mrf.mxu0
    %v218 = vadd.f32 0.0, %v217
    %219 = vmatmul.f32.gmra.mxu0 %v108
    %v220 = vpop.f32.mrf.mxu0
    %v221 = vadd.f32 0.0, %v220
    %222 = vmatmul.f32.gmra.mxu0 %v111
    %v223 = vpop.f32.mrf.mxu0
    %v224 = vadd.f32 0.0, %v223
    %225 = vmatmul.f32.gmra.mxu0 %v114
    %v226 = vpop.f32.mrf.mxu0
    %v227 = vadd.f32 0.0, %v226
    %228 = vmatmul.f32.gmra.mxu0 %v117
    %v229 = vpop.f32.mrf.mxu0
    %v230 = vadd.f32 0.0, %v229
    %231 = vmatmul.f32.gmra.mxu0 %v120
    %v232 = vpop.f32.mrf.mxu0
    %v233 = vadd.f32 0.0, %v232
    %234 = vmatmul.f32.gmra.mxu0 %v123
    %v235 = vpop.f32.mrf.mxu0
    %v236 = vadd.f32 0.0, %v235
    %237 = vmatmul.f32.gmra.mxu0 %v126
    %v238 = vpop.f32.mrf.mxu0
    %v239 = vadd.f32 0.0, %v238
    %240 = vmatmul.f32.gmra.mxu0 %v129
    %v241 = vpop.f32.mrf.mxu0
    %v242 = vadd.f32 0.0, %v241
    %243 = vmatmul.f32.gmra.mxu0 %v132
    %v244 = vpop.f32.mrf.mxu0
    %v245 = vadd.f32 0.0, %v244
    %246 = vmatmul.f32.gmra.mxu0 %v135
    %v247 = vpop.f32.mrf.mxu0
    %v248 = vadd.f32 0.0, %v247
    %249 = vmatmul.f32.gmra.mxu0 %v138
    %v250 = vpop.f32.mrf.mxu0
    %v251 = vadd.f32 0.0, %v250
    %252 = vmatmul.f32.gmra.mxu0 %v141
    %v253 = vpop.f32.mrf.mxu0
    %v254 = vadd.f32 0.0, %v253
    %255 = vmatmul.f32.gmra.mxu0 %v144
    %v256 = vpop.f32.mrf.mxu0
    %v257 = vadd.f32 0.0, %v256
    %258 = vmatmul.f32.gmra.mxu0 %v147
    %v259 = vpop.f32.mrf.mxu0
    %v260 = vadd.f32 0.0, %v259
    %261 = vmatmul.f32.gmra.mxu0 %v150
    %v262 = vpop.f32.mrf.mxu0
    %v263 = vadd.f32 0.0, %v262
    %264 = vmatmul.f32.gmra.mxu0 %v153
    %v265 = vpop.f32.mrf.mxu0
    %v266 = vadd.f32 0.0, %v265
    %267 = vmatmul.f32.gmra.mxu0 %v156
    %v268 = vpop.f32.mrf.mxu0
    %v269 = vadd.f32 0.0, %v268
    %270 = vmatmul.f32.gmra.mxu0 %v159
    %v271 = vpop.f32.mrf.mxu0
    %v272 = vadd.f32 0.0, %v271
    %273 = vmatmul.f32.gmra.mxu0 %v162
    %v274 = vpop.f32.mrf.mxu0
    %v275 = vadd.f32 0.0, %v274
    %276 = vmatmul.f32.gmra.mxu0 %v165
    %v277 = vpop.f32.mrf.mxu0
    %v278 = vadd.f32 0.0, %v277
    %279 = vmatmul.f32.gmra.mxu0 %v168
    %v280 = vpop.f32.mrf.mxu0
    %v281 = vadd.f32 0.0, %v280
    %282 = vmatmul.f32.gmra.mxu0 %v171
    %v283 = vpop.f32.mrf.mxu0
    %v284 = vadd.f32 0.0, %v283
    %285 = vmatmul.f32.gmra.mxu0 %v174
    %v286 = vpop.f32.mrf.mxu0
    %v287 = vadd.f32 0.0, %v286
    %288 = vmatmul.f32.gmra.mxu0 %v177
    %v289 = vpop.f32.mrf.mxu0
    %v290 = vadd.f32 0.0, %v289
    %291 = vmatmul.f32.gmra.mxu0 %v180
    %v292 = vpop.f32.mrf.mxu0
    %v293 = vadd.f32 0.0, %v292
    %294 = vmatmul.f32.gmra.mxu0 %v183
    %v295 = vpop.f32.mrf.mxu0
    %v296 = vadd.f32 0.0, %v295
    %297 = vmatmul.f32.gmra.mxu0 %v186
    %v298 = vpop.f32.mrf.mxu0
    %v299 = vadd.f32 0.0, %v298
    %300 = vmatmul.f32.gmra.mxu0 %v189
    %v301 = vpop.f32.mrf.mxu0
    %v302 = vadd.f32 0.0, %v301
    %303 = vmatmul.f32.gmra.mxu0 %v192
    %v304 = vpop.f32.mrf.mxu0
    %v305 = vadd.f32 0.0, %v304
    %306 = vmatmul.f32.gmra.mxu0 %v195
    %v307 = vpop.f32.mrf.mxu0
    %v308 = vadd.f32 0.0, %v307
    %309 = vmatmul.f32.gmra.mxu0 %v198
    %v310 = vpop.f32.mrf.mxu0
    %v311 = vadd.f32 0.0, %v310
    %312 = vdwg.mxu0
    %v314 = vsel %vm103, %v35, 0
    %v317 = vsel %vm103, %v36, 0
    %v320 = vsel %vm103, %v37, 0
    %v323 = vsel %vm103, %v38, 0
    %v326 = vsel %vm103, %v39, 0
    %v329 = vsel %vm103, %v40, 0
    %v332 = vsel %vm103, %v41, 0
    %v335 = vsel %vm103, %v42, 0
    %v338 = vsel %vm103, %v43, 0
    %v341 = vsel %vm103, %v44, 0
    %v344 = vsel %vm103, %v45, 0
    %v347 = vsel %vm103, %v46, 0
    %v350 = vsel %vm103, %v47, 0
    %v353 = vsel %vm103, %v48, 0
    %v356 = vsel %vm103, %v49, 0
    %v359 = vsel %vm103, %v50, 0
    %v362 = vsel %vm103, %v51, 0
    %v365 = vsel %vm103, %v52, 0
    %v368 = vsel %vm103, %v53, 0
    %v371 = vsel %vm103, %v54, 0
    %v374 = vsel %vm103, %v55, 0
    %v377 = vsel %vm103, %v56, 0
    %v380 = vsel %vm103, %v57, 0
    %v383 = vsel %vm103, %v58, 0
    %v386 = vsel %vm103, %v59, 0
    %v389 = vsel %vm103, %v60, 0
    %v392 = vsel %vm103, %v61, 0
    %v395 = vsel %vm103, %v62, 0
    %v398 = vsel %vm103, %v63, 0
    %v401 = vsel %vm103, %v64, 0
    %v404 = vsel %vm103, %v65, 0
    %v407 = vsel %vm103, %v66, 0
    %409 = vmatpush.msra.mxu0 0.0
    %410 = vmatpush.msra.mxu0 0.0
    %411 = vmatpush.msra.mxu0 0.0
    %412 = vmatpush.msra.mxu0 0.0
    %413 = vmatpush.msra.mxu0 0.0
    %414 = vmatpush.msra.mxu0 0.0
    %415 = vmatpush.msra.mxu0 0.0
    %416 = vmatpush.msra.mxu0 0.0
    %417 = vmatpush.msra.mxu0 0.0
    %418 = vmatpush.msra.mxu0 0.0
    %419 = vmatpush.msra.mxu0 0.0
    %420 = vmatpush.msra.mxu0 0.0
    %421 = vmatpush.msra.mxu0 0.0
    %422 = vmatpush.msra.mxu0 0.0
    %423 = vmatpush.msra.mxu0 %v68
    %424 = vmatpush.msra.mxu0 %v67
    %425 = vmatmul.f32.gmra.mxu0 %v314
    %v426 = vpop.f32.mrf.mxu0
    %v427 = vadd.f32 %v218, %v426
    %428 = vmatmul.f32.gmra.mxu0 %v317
    %v429 = vpop.f32.mrf.mxu0
    %v430 = vadd.f32 %v221, %v429
    %431 = vmatmul.f32.gmra.mxu0 %v320
    %v432 = vpop.f32.mrf.mxu0
    %v433 = vadd.f32 %v224, %v432
    %434 = vmatmul.f32.gmra.mxu0 %v323
    %v435 = vpop.f32.mrf.mxu0
    %v436 = vadd.f32 %v227, %v435
    %437 = vmatmul.f32.gmra.mxu0 %v326
    %v438 = vpop.f32.mrf.mxu0
    %v439 = vadd.f32 %v230, %v438
    %440 = vmatmul.f32.gmra.mxu0 %v329
    %v441 = vpop.f32.mrf.mxu0
    %v442 = vadd.f32 %v233, %v441
    %443 = vmatmul.f32.gmra.mxu0 %v332
    %v444 = vpop.f32.mrf.mxu0
    %v445 = vadd.f32 %v236, %v444
    %446 = vmatmul.f32.gmra.mxu0 %v335
    %v447 = vpop.f32.mrf.mxu0
    %v448 = vadd.f32 %v239, %v447
    %449 = vmatmul.f32.gmra.mxu0 %v338
    %v450 = vpop.f32.mrf.mxu0
    %v451 = vadd.f32 %v242, %v450
    %452 = vmatmul.f32.gmra.mxu0 %v341
    %v453 = vpop.f32.mrf.mxu0
    %v454 = vadd.f32 %v245, %v453
    %455 = vmatmul.f32.gmra.mxu0 %v344
    %v456 = vpop.f32.mrf.mxu0
    %v457 = vadd.f32 %v248, %v456
    %458 = vmatmul.f32.gmra.mxu0 %v347
    %v459 = vpop.f32.mrf.mxu0
    %v460 = vadd.f32 %v251, %v459
    %461 = vmatmul.f32.gmra.mxu0 %v350
    %v462 = vpop.f32.mrf.mxu0
    %v463 = vadd.f32 %v254, %v462
    %464 = vmatmul.f32.gmra.mxu0 %v353
    %v465 = vpop.f32.mrf.mxu0
    %v466 = vadd.f32 %v257, %v465
    %467 = vmatmul.f32.gmra.mxu0 %v356
    %v468 = vpop.f32.mrf.mxu0
    %v469 = vadd.f32 %v260, %v468
    %470 = vmatmul.f32.gmra.mxu0 %v359
    %v471 = vpop.f32.mrf.mxu0
    %v472 = vadd.f32 %v263, %v471
    %473 = vmatmul.f32.gmra.mxu0 %v362
    %v474 = vpop.f32.mrf.mxu0
    %v475 = vadd.f32 %v266, %v474
    %476 = vmatmul.f32.gmra.mxu0 %v365
    %v477 = vpop.f32.mrf.mxu0
    %v478 = vadd.f32 %v269, %v477
    %479 = vmatmul.f32.gmra.mxu0 %v368
    %v480 = vpop.f32.mrf.mxu0
    %v481 = vadd.f32 %v272, %v480
    %482 = vmatmul.f32.gmra.mxu0 %v371
    %v483 = vpop.f32.mrf.mxu0
    %v484 = vadd.f32 %v275, %v483
    %485 = vmatmul.f32.gmra.mxu0 %v374
    %v486 = vpop.f32.mrf.mxu0
    %v487 = vadd.f32 %v278, %v486
    %488 = vmatmul.f32.gmra.mxu0 %v377
    %v489 = vpop.f32.mrf.mxu0
    %v490 = vadd.f32 %v281, %v489
    %491 = vmatmul.f32.gmra.mxu0 %v380
    %v492 = vpop.f32.mrf.mxu0
    %v493 = vadd.f32 %v284, %v492
    %494 = vmatmul.f32.gmra.mxu0 %v383
    %v495 = vpop.f32.mrf.mxu0
    %v496 = vadd.f32 %v287, %v495
    %497 = vmatmul.f32.gmra.mxu0 %v386
    %v498 = vpop.f32.mrf.mxu0
    %v499 = vadd.f32 %v290, %v498
    %500 = vmatmul.f32.gmra.mxu0 %v389
    %v501 = vpop.f32.mrf.mxu0
    %v502 = vadd.f32 %v293, %v501
    %503 = vmatmul.f32.gmra.mxu0 %v392
    %v504 = vpop.f32.mrf.mxu0
    %v505 = vadd.f32 %v296, %v504
    %506 = vmatmul.f32.gmra.mxu0 %v395
    %v507 = vpop.f32.mrf.mxu0
    %v508 = vadd.f32 %v299, %v507
    %509 = vmatmul.f32.gmra.mxu0 %v398
    %v510 = vpop.f32.mrf.mxu0
    %v511 = vadd.f32 %v302, %v510
    %512 = vmatmul.f32.gmra.mxu0 %v401
    %v513 = vpop.f32.mrf.mxu0
    %v514 = vadd.f32 %v305, %v513
    %515 = vmatmul.f32.gmra.mxu0 %v404
    %v516 = vpop.f32.mrf.mxu0
    %v517 = vadd.f32 %v308, %v516
    %518 = vmatmul.f32.gmra.mxu0 %v407
    %v519 = vpop.f32.mrf.mxu0
    %v520 = vadd.f32 %v311, %v519
    %521 = vdwg.mxu0
    %v522 = vld [vmem:[%s2] sm:$0xff]
    %v523 = vld [vmem:[%s2 + $0x8] sm:$0xff]
    %v524 = vld [vmem:[%s2 + $0x10] sm:$0xff]
    %v525 = vld [vmem:[%s2 + $0x18] sm:$0xff]
    %v526 = vld [vmem:[%s2 + $0x20] sm:$0xff]
    %v527 = vld [vmem:[%s2 + $0x28] sm:$0xff]
    %v528 = vld [vmem:[%s2 + $0x30] sm:$0xff]
    %v529 = vld [vmem:[%s2 + $0x38] sm:$0xff]
    %v530 = vld [vmem:[%s2 + $0x40] sm:$0xff]
    %v531 = vld [vmem:[%s2 + $0x48] sm:$0xff]
    %v532 = vld [vmem:[%s2 + $0x50] sm:$0xff]
    %v533 = vld [vmem:[%s2 + $0x58] sm:$0xff]
    %v534 = vld [vmem:[%s2 + $0x60] sm:$0xff]
    %v535 = vld [vmem:[%s2 + $0x68] sm:$0xff]
    %v536 = vld [vmem:[%s2 + $0x70] sm:$0xff]
    %v537 = vld [vmem:[%s2 + $0x78] sm:$0xff]
    %v538 = vld [vmem:[%s2 + $0x80] sm:$0xff]
    %v539 = vld [vmem:[%s2 + $0x88] sm:$0xff]
    %v540 = vld [vmem:[%s2 + $0x90] sm:$0xff]
    %v541 = vld [vmem:[%s2 + $0x98] sm:$0xff]
    %v542 = vld [vmem:[%s2 + $0xa0] sm:$0xff]
    %v543 = vld [vmem:[%s2 + $0xa8] sm:$0xff]
    %v544 = vld [vmem:[%s2 + $0xb0] sm:$0xff]
    %v545 = vld [vmem:[%s2 + $0xb8] sm:$0xff]
    %v546 = vld [vmem:[%s2 + $0xc0] sm:$0xff]
    %v547 = vld [vmem:[%s2 + $0xc8] sm:$0xff]
    %v548 = vld [vmem:[%s2 + $0xd0] sm:$0xff]
    %v549 = vld [vmem:[%s2 + $0xd8] sm:$0xff]
    %v550 = vld [vmem:[%s2 + $0xe0] sm:$0xff]
    %v551 = vld [vmem:[%s2 + $0xe8] sm:$0xff]
    %v552 = vld [vmem:[%s2 + $0xf0] sm:$0xff]
    %v553 = vld [vmem:[%s2 + $0xf8] sm:$0xff]
    %v554 = vld [vmem:[%s5] sm:$0xff]
    %v555 = vld [vmem:[%s5 + $0x8] sm:$0xff]
    %v557 = vsel %vm103, %v522, 0
    %v560 = vsel %vm103, %v523, 0
    %v563 = vsel %vm103, %v524, 0
    %v566 = vsel %vm103, %v525, 0
    %v569 = vsel %vm103, %v526, 0
    %v572 = vsel %vm103, %v527, 0
    %v575 = vsel %vm103, %v528, 0
    %v578 = vsel %vm103, %v529, 0
    %v581 = vsel %vm103, %v530, 0
    %v584 = vsel %vm103, %v531, 0
    %v587 = vsel %vm103, %v532, 0
    %v590 = vsel %vm103, %v533, 0
    %v593 = vsel %vm103, %v534, 0
    %v596 = vsel %vm103, %v535, 0
    %v599 = vsel %vm103, %v536, 0
    %v602 = vsel %vm103, %v537, 0
    %v605 = vsel %vm103, %v538, 0
    %v608 = vsel %vm103, %v539, 0
    %v611 = vsel %vm103, %v540, 0
    %v614 = vsel %vm103, %v541, 0
    %v617 = vsel %vm103, %v542, 0
    %v620 = vsel %vm103, %v543, 0
    %v623 = vsel %vm103, %v544, 0
    %v626 = vsel %vm103, %v545, 0
    %v629 = vsel %vm103, %v546, 0
    %v632 = vsel %vm103, %v547, 0
    %v635 = vsel %vm103, %v548, 0
    %v638 = vsel %vm103, %v549, 0
    %v641 = vsel %vm103, %v550, 0
    %v644 = vsel %vm103, %v551, 0
    %v647 = vsel %vm103, %v552, 0
    %v650 = vsel %vm103, %v553, 0
    %652 = vmatpush.msra.mxu0 0.0
    %653 = vmatpush.msra.mxu0 0.0
    %654 = vmatpush.msra.mxu0 0.0
    %655 = vmatpush.msra.mxu0 0.0
    %656 = vmatpush.msra.mxu0 0.0
    %657 = vmatpush.msra.mxu0 0.0
    %658 = vmatpush.msra.mxu0 0.0
    %659 = vmatpush.msra.mxu0 0.0
    %660 = vmatpush.msra.mxu0 0.0
    %661 = vmatpush.msra.mxu0 0.0
    %662 = vmatpush.msra.mxu0 0.0
    %663 = vmatpush.msra.mxu0 0.0
    %664 = vmatpush.msra.mxu0 0.0
    %665 = vmatpush.msra.mxu0 0.0
    %666 = vmatpush.msra.mxu0 %v555
    %667 = vmatpush.msra.mxu0 %v554
    %668 = vmatmul.f32.gmra.mxu0 %v557
    %v669 = vpop.f32.mrf.mxu0
    %v670 = vadd.f32 0.0, %v669
    %671 = vmatmul.f32.gmra.mxu0 %v560
    %v672 = vpop.f32.mrf.mxu0
    %v673 = vadd.f32 0.0, %v672
    %674 = vmatmul.f32.gmra.mxu0 %v563
    %v675 = vpop.f32.mrf.mxu0
    %v676 = vadd.f32 0.0, %v675
    %677 = vmatmul.f32.gmra.mxu0 %v566
    %v678 = vpop.f32.mrf.mxu0
    %v679 = vadd.f32 0.0, %v678
    %680 = vmatmul.f32.gmra.mxu0 %v569
    %v681 = vpop.f32.mrf.mxu0
    %v682 = vadd.f32 0.0, %v681
    %683 = vmatmul.f32.gmra.mxu0 %v572
    %v684 = vpop.f32.mrf.mxu0
    %v685 = vadd.f32 0.0, %v684
    %686 = vmatmul.f32.gmra.mxu0 %v575
    %v687 = vpop.f32.mrf.mxu0
    %v688 = vadd.f32 0.0, %v687
    %689 = vmatmul.f32.gmra.mxu0 %v578
    %v690 = vpop.f32.mrf.mxu0
    %v691 = vadd.f32 0.0, %v690
    %692 = vmatmul.f32.gmra.mxu0 %v581
    %v693 = vpop.f32.mrf.mxu0
    %v694 = vadd.f32 0.0, %v693
    %695 = vmatmul.f32.gmra.mxu0 %v584
    %v696 = vpop.f32.mrf.mxu0
    %v697 = vadd.f32 0.0, %v696
    %698 = vmatmul.f32.gmra.mxu0 %v587
    %v699 = vpop.f32.mrf.mxu0
    %v700 = vadd.f32 0.0, %v699
    %701 = vmatmul.f32.gmra.mxu0 %v590
    %v702 = vpop.f32.mrf.mxu0
    %v703 = vadd.f32 0.0, %v702
    %704 = vmatmul.f32.gmra.mxu0 %v593
    %v705 = vpop.f32.mrf.mxu0
    %v706 = vadd.f32 0.0, %v705
    %707 = vmatmul.f32.gmra.mxu0 %v596
    %v708 = vpop.f32.mrf.mxu0
    %v709 = vadd.f32 0.0, %v708
    %710 = vmatmul.f32.gmra.mxu0 %v599
    %v711 = vpop.f32.mrf.mxu0
    %v712 = vadd.f32 0.0, %v711
    %713 = vmatmul.f32.gmra.mxu0 %v602
    %v714 = vpop.f32.mrf.mxu0
    %v715 = vadd.f32 0.0, %v714
    %716 = vmatmul.f32.gmra.mxu0 %v605
    %v717 = vpop.f32.mrf.mxu0
    %v718 = vadd.f32 0.0, %v717
    %719 = vmatmul.f32.gmra.mxu0 %v608
    %v720 = vpop.f32.mrf.mxu0
    %v721 = vadd.f32 0.0, %v720
    %722 = vmatmul.f32.gmra.mxu0 %v611
    %v723 = vpop.f32.mrf.mxu0
    %v724 = vadd.f32 0.0, %v723
    %725 = vmatmul.f32.gmra.mxu0 %v614
    %v726 = vpop.f32.mrf.mxu0
    %v727 = vadd.f32 0.0, %v726
    %728 = vmatmul.f32.gmra.mxu0 %v617
    %v729 = vpop.f32.mrf.mxu0
    %v730 = vadd.f32 0.0, %v729
    %731 = vmatmul.f32.gmra.mxu0 %v620
    %v732 = vpop.f32.mrf.mxu0
    %v733 = vadd.f32 0.0, %v732
    %734 = vmatmul.f32.gmra.mxu0 %v623
    %v735 = vpop.f32.mrf.mxu0
    %v736 = vadd.f32 0.0, %v735
    %737 = vmatmul.f32.gmra.mxu0 %v626
    %v738 = vpop.f32.mrf.mxu0
    %v739 = vadd.f32 0.0, %v738
    %740 = vmatmul.f32.gmra.mxu0 %v629
    %v741 = vpop.f32.mrf.mxu0
    %v742 = vadd.f32 0.0, %v741
    %743 = vmatmul.f32.gmra.mxu0 %v632
    %v744 = vpop.f32.mrf.mxu0
    %v745 = vadd.f32 0.0, %v744
    %746 = vmatmul.f32.gmra.mxu0 %v635
    %v747 = vpop.f32.mrf.mxu0
    %v748 = vadd.f32 0.0, %v747
    %749 = vmatmul.f32.gmra.mxu0 %v638
    %v750 = vpop.f32.mrf.mxu0
    %v751 = vadd.f32 0.0, %v750
    %752 = vmatmul.f32.gmra.mxu0 %v641
    %v753 = vpop.f32.mrf.mxu0
    %v754 = vadd.f32 0.0, %v753
    %755 = vmatmul.f32.gmra.mxu0 %v644
    %v756 = vpop.f32.mrf.mxu0
    %v757 = vadd.f32 0.0, %v756
    %758 = vmatmul.f32.gmra.mxu0 %v647
    %v759 = vpop.f32.mrf.mxu0
    %v760 = vadd.f32 0.0, %v759
    %761 = vmatmul.f32.gmra.mxu0 %v650
    %v762 = vpop.f32.mrf.mxu0
    %v763 = vadd.f32 0.0, %v762
    %764 = vdwg.mxu0
    %v765 = vadd.f32 %v427, %v670
    %v766 = vadd.f32 %v430, %v673
    %v767 = vadd.f32 %v433, %v676
    %v768 = vadd.f32 %v436, %v679
    %v769 = vadd.f32 %v439, %v682
    %v770 = vadd.f32 %v442, %v685
    %v771 = vadd.f32 %v445, %v688
    %v772 = vadd.f32 %v448, %v691
    %v773 = vadd.f32 %v451, %v694
    %v774 = vadd.f32 %v454, %v697
    %v775 = vadd.f32 %v457, %v700
    %v776 = vadd.f32 %v460, %v703
    %v777 = vadd.f32 %v463, %v706
    %v778 = vadd.f32 %v466, %v709
    %v779 = vadd.f32 %v469, %v712
    %v780 = vadd.f32 %v472, %v715
    %v781 = vadd.f32 %v475, %v718
    %v782 = vadd.f32 %v478, %v721
    %v783 = vadd.f32 %v481, %v724
    %v784 = vadd.f32 %v484, %v727
    %v785 = vadd.f32 %v487, %v730
    %v786 = vadd.f32 %v490, %v733
    %v787 = vadd.f32 %v493, %v736
    %v788 = vadd.f32 %v496, %v739
    %v789 = vadd.f32 %v499, %v742
    %v790 = vadd.f32 %v502, %v745
    %v791 = vadd.f32 %v505, %v748
    %v792 = vadd.f32 %v508, %v751
    %v793 = vadd.f32 %v511, %v754
    %v794 = vadd.f32 %v514, %v757
    %v795 = vadd.f32 %v517, %v760
    %v796 = vadd.f32 %v520, %v763
    %v797 = vld [vmem:[%s6] sm:$0x1]
    %v799 = vperm.slane %v797, 0
    %v801 = vadd.f32 %v765, %v799
    %v802 = vadd.f32 %v766, %v799
    %v803 = vadd.f32 %v767, %v799
    %v804 = vadd.f32 %v768, %v799
    %v805 = vadd.f32 %v769, %v799
    %v806 = vadd.f32 %v770, %v799
    %v807 = vadd.f32 %v771, %v799
    %v808 = vadd.f32 %v772, %v799
    %v809 = vadd.f32 %v773, %v799
    %v810 = vadd.f32 %v774, %v799
    %v811 = vadd.f32 %v775, %v799
    %v812 = vadd.f32 %v776, %v799
    %v813 = vadd.f32 %v777, %v799
    %v814 = vadd.f32 %v778, %v799
    %v815 = vadd.f32 %v779, %v799
    %v816 = vadd.f32 %v780, %v799
    %v817 = vadd.f32 %v781, %v799
    %v818 = vadd.f32 %v782, %v799
    %v819 = vadd.f32 %v783, %v799
    %v820 = vadd.f32 %v784, %v799
    %v821 = vadd.f32 %v785, %v799
    %v822 = vadd.f32 %v786, %v799
    %v823 = vadd.f32 %v787, %v799
    %v824 = vadd.f32 %v788, %v799
    %v825 = vadd.f32 %v789, %v799
    %v826 = vadd.f32 %v790, %v799
    %v827 = vadd.f32 %v791, %v799
    %v828 = vadd.f32 %v792, %v799
    %v829 = vadd.f32 %v793, %v799
    %v830 = vadd.f32 %v794, %v799
    %v831 = vadd.f32 %v795, %v799
    %v832 = vadd.f32 %v796, %v799
    %v833 = vmax.f32 %v801, 0.0
    %v834 = vmax.f32 %v802, 0.0
    %v835 = vmax.f32 %v803, 0.0
    %v836 = vmax.f32 %v804, 0.0
    %v837 = vmax.f32 %v805, 0.0
    %v838 = vmax.f32 %v806, 0.0
    %v839 = vmax.f32 %v807, 0.0
    %v840 = vmax.f32 %v808, 0.0
    %v841 = vmax.f32 %v809, 0.0
    %v842 = vmax.f32 %v810, 0.0
    %v843 = vmax.f32 %v811, 0.0
    %v844 = vmax.f32 %v812, 0.0
    %v845 = vmax.f32 %v813, 0.0
    %v846 = vmax.f32 %v814, 0.0
    %v847 = vmax.f32 %v815, 0.0
    %v848 = vmax.f32 %v816, 0.0
    %v849 = vmax.f32 %v817, 0.0
    %v850 = vmax.f32 %v818, 0.0
    %v851 = vmax.f32 %v819, 0.0
    %v852 = vmax.f32 %v820, 0.0
    %v853 = vmax.f32 %v821, 0.0
    %v854 = vmax.f32 %v822, 0.0
    %v855 = vmax.f32 %v823, 0.0
    %v856 = vmax.f32 %v824, 0.0
    %v857 = vmax.f32 %v825, 0.0
    %v858 = vmax.f32 %v826, 0.0
    %v859 = vmax.f32 %v827, 0.0
    %v860 = vmax.f32 %v828, 0.0
    %v861 = vmax.f32 %v829, 0.0
    %v862 = vmax.f32 %v830, 0.0
    %v863 = vmax.f32 %v831, 0.0
    %v864 = vmax.f32 %v832, 0.0
    %v865 = vld [vmem:[%s7] sm:$0x1]
    %v867 = vperm.slane %v865, 0
    %v869 = vmul.f32 %v833, %v867
    %v870 = vmul.f32 %v834, %v867
    %v871 = vmul.f32 %v835, %v867
    %v872 = vmul.f32 %v836, %v867
    %v873 = vmul.f32 %v837, %v867
    %v874 = vmul.f32 %v838, %v867
    %v875 = vmul.f32 %v839, %v867
    %v876 = vmul.f32 %v840, %v867
    %v877 = vmul.f32 %v841, %v867
    %v878 = vmul.f32 %v842, %v867
    %v879 = vmul.f32 %v843, %v867
    %v880 = vmul.f32 %v844, %v867
    %v881 = vmul.f32 %v845, %v867
    %v882 = vmul.f32 %v846, %v867
    %v883 = vmul.f32 %v847, %v867
    %v884 = vmul.f32 %v848, %v867
    %v885 = vmul.f32 %v849, %v867
    %v886 = vmul.f32 %v850, %v867
    %v887 = vmul.f32 %v851, %v867
    %v888 = vmul.f32 %v852, %v867
    %v889 = vmul.f32 %v853, %v867
    %v890 = vmul.f32 %v854, %v867
    %v891 = vmul.f32 %v855, %v867
    %v892 = vmul.f32 %v856, %v867
    %v893 = vmul.f32 %v857, %v867
    %v894 = vmul.f32 %v858, %v867
    %v895 = vmul.f32 %v859, %v867
    %v896 = vmul.f32 %v860, %v867
    %v897 = vmul.f32 %v861, %v867
    %v898 = vmul.f32 %v862, %v867
    %v899 = vmul.f32 %v863, %v867
    %v900 = vmul.f32 %v864, %v867
    %901 = vxpose.xlu0.b32.start [1/16] %v869, 128
    %902 = vxpose.xlu0.b32.cont [2/16] %v870, 128
    %903 = vxpose.xlu0.b32.cont [3/16] %v871, 128
    %904 = vxpose.xlu0.b32.cont [4/16] %v872, 128
    %905 = vxpose.xlu0.b32.cont [5/16] %v873, 128
    %906 = vxpose.xlu0.b32.cont [6/16] %v874, 128
    %907 = vxpose.xlu0.b32.cont [7/16] %v875, 128
    %908 = vxpose.xlu0.b32.cont [8/16] %v876, 128
    %909 = vxpose.xlu0.b32.cont [9/16] %v877, 128
    %910 = vxpose.xlu0.b32.cont [10/16] %v878, 128
    %911 = vxpose.xlu0.b32.cont [11/16] %v879, 128
    %912 = vxpose.xlu0.b32.cont [12/16] %v880, 128
    %913 = vxpose.xlu0.b32.cont [13/16] %v881, 128
    %914 = vxpose.xlu0.b32.cont [14/16] %v882, 128
    %915 = vxpose.xlu0.b32.cont [15/16] %v883, 128
    %916 = vxpose.xlu0.b32.end [16/16] %v884, 128
    %v917 = vpop.trf.xlu0
    %v918 = vpop.trf.xlu0
    %v919 = vpop.trf.xlu0
    %v920 = vpop.trf.xlu0
    %v921 = vpop.trf.xlu0
    %v922 = vpop.trf.xlu0
    %v923 = vpop.trf.xlu0
    %v924 = vpop.trf.xlu0
    %v925 = vpop.trf.xlu0
    %v926 = vpop.trf.xlu0
    %v927 = vpop.trf.xlu0
    %v928 = vpop.trf.xlu0
    %v929 = vpop.trf.xlu0
    %v930 = vpop.trf.xlu0
    %v931 = vpop.trf.xlu0
    %v932 = vpop.trf.xlu0
    %933 = vxpose.xlu0.b32.start [1/16] %v885, 128
    %934 = vxpose.xlu0.b32.cont [2/16] %v886, 128
    %935 = vxpose.xlu0.b32.cont [3/16] %v887, 128
    %936 = vxpose.xlu0.b32.cont [4/16] %v888, 128
    %937 = vxpose.xlu0.b32.cont [5/16] %v889, 128
    %938 = vxpose.xlu0.b32.cont [6/16] %v890, 128
    %939 = vxpose.xlu0.b32.cont [7/16] %v891, 128
    %940 = vxpose.xlu0.b32.cont [8/16] %v892, 128
    %941 = vxpose.xlu0.b32.cont [9/16] %v893, 128
    %942 = vxpose.xlu0.b32.cont [10/16] %v894, 128
    %943 = vxpose.xlu0.b32.cont [11/16] %v895, 128
    %944 = vxpose.xlu0.b32.cont [12/16] %v896, 128
    %945 = vxpose.xlu0.b32.cont [13/16] %v897, 128
    %946 = vxpose.xlu0.b32.cont [14/16] %v898, 128
    %947 = vxpose.xlu0.b32.cont [15/16] %v899, 128
    %948 = vxpose.xlu0.b32.end [16/16] %v900, 128
    %v949 = vpop.trf.xlu0
    %v950 = vpop.trf.xlu0
    %v951 = vpop.trf.xlu0
    %v952 = vpop.trf.xlu0
    %v953 = vpop.trf.xlu0
    %v954 = vpop.trf.xlu0
    %v955 = vpop.trf.xlu0
    %v956 = vpop.trf.xlu0
    %v957 = vpop.trf.xlu0
    %v958 = vpop.trf.xlu0
    %v959 = vpop.trf.xlu0
    %v960 = vpop.trf.xlu0
    %v961 = vpop.trf.xlu0
    %v962 = vpop.trf.xlu0
    %v963 = vpop.trf.xlu0
    %v964 = vpop.trf.xlu0
    %v965 = vadd.f32 %v917, %v918
    %v966 = vadd.f32 %v965, %v919
    %v967 = vadd.f32 %v966, %v920
    %v968 = vadd.f32 %v967, %v921
    %v969 = vadd.f32 %v968, %v922
    %v970 = vadd.f32 %v969, %v923
    %v971 = vadd.f32 %v970, %v924
    %v972 = vadd.f32 %v971, %v925
    %v973 = vadd.f32 %v972, %v926
    %v974 = vadd.f32 %v973, %v927
    %v975 = vadd.f32 %v974, %v928
    %v976 = vadd.f32 %v975, %v929
    %v977 = vadd.f32 %v976, %v930
    %v978 = vadd.f32 %v977, %v931
    %v979 = vadd.f32 %v978, %v932
    %v980 = vrot.slane %v979, 4
    %v981 = vadd.f32 %v979, %v980
    %v982 = vrot.slane %v981, 2
    %v983 = vadd.f32 %v981, %v982
    %v984 = vrot.slane %v983, 1
    %v985 = vadd.f32 %v983, %v984
    %v986 = vadd.f32 %v949, %v950
    %v987 = vadd.f32 %v986, %v951
    %v988 = vadd.f32 %v987, %v952
    %v989 = vadd.f32 %v988, %v953
    %v990 = vadd.f32 %v989, %v954
    %v991 = vadd.f32 %v990, %v955
    %v992 = vadd.f32 %v991, %v956
    %v993 = vadd.f32 %v992, %v957
    %v994 = vadd.f32 %v993, %v958
    %v995 = vadd.f32 %v994, %v959
    %v996 = vadd.f32 %v995, %v960
    %v997 = vadd.f32 %v996, %v961
    %v998 = vadd.f32 %v997, %v962
    %v999 = vadd.f32 %v998, %v963
    %v1000 = vadd.f32 %v999, %v964
    %v1001 = vrot.slane %v1000, 4
    %v1002 = vadd.f32 %v1000, %v1001
    %v1003 = vrot.slane %v1002, 2
    %v1004 = vadd.f32 %v1002, %v1003
    %v1005 = vrot.slane %v1004, 1
    %v1006 = vadd.f32 %v1004, %v1005
    %v1007 = vld [vmem:[#allocation2] sm:$0x1]
    %1009 = vset.pattern.permute.xlu0 0
    %1010 = vperm.xlu0 %1009, %v1007
    %v1011 = vpop.permute.xlu0 %1010
    %v1013 = vperm.slane %v1011, 0
    %v1014 = vadd.f32 %v985, %v1013
    %v1015 = vadd.f32 %v1006, %v1013
    %v1016 = vsub.f32 0.0, %v1014
    %v1017 = vsub.f32 0.0, %v1015
    %v1018 = vmul.f32 %v1016, 1.442695
    %v1019 = vpow.pop %v1018
    %v1020 = vmul.f32 %v1017, 1.442695
    %v1021 = vpow.pop %v1020
    %v1022 = vadd.f32 %v1019, 1.0
    %v1023 = vadd.f32 %v1021, 1.0
    %v1024 = vrcp.pop %v1022
    %v1025 = vmul.f32 %v1022, %v1024
    %v1026 = vsub.f32 1.0, %v1025
    %v1027 = vmul.f32 %v1024, %v1026
    %v1028 = vadd.f32 %v1024, %v1027
    %vm1029 = vweird.f32 %v1022
    %vm1030 = vweird.f32 %v1024
    %vm1031 = vmor %vm1029, %vm1030
    %v1032 = vsel %vm1031, %v1024, %v1028
    %v1033 = vand.u32 2147483647, %v1022
    %vm1034 = vcmp.eq.f32.partialorder %v1033, 8.507059e+37
    %v1035 = vand.u32 %v1022, 2147483648
    %v1036 = vor.u32 1.1754944e-38, %v1035
    %v1037 = vsel %vm1034, %v1036, %v1032
    %v1038 = vmul.f32 1.0, %v1037
    %v1039 = vrcp.pop %v1023
    %v1040 = vmul.f32 %v1023, %v1039
    %v1041 = vsub.f32 1.0, %v1040
    %v1042 = vmul.f32 %v1039, %v1041
    %v1043 = vadd.f32 %v1039, %v1042
    %vm1044 = vweird.f32 %v1023
    %vm1045 = vweird.f32 %v1039
    %vm1046 = vmor %vm1044, %vm1045
    %v1047 = vsel %vm1046, %v1039, %v1043
    %v1048 = vand.u32 2147483647, %v1023
    %vm1049 = vcmp.eq.f32.partialorder %v1048, 8.507059e+37
    %v1050 = vand.u32 %v1023, 2147483648
    %v1051 = vor.u32 1.1754944e-38, %v1050
    %v1052 = vsel %vm1049, %v1051, %v1047
    %v1053 = vmul.f32 1.0, %v1052
    %v1056 = vrot.slane %v1053, 7
    %vm1057 = vcmask 1040384
    %v1058 = vsel %vm1057, %v1038, %v1056
    %v1060 = vlaneseq
    %vm1061 = vcmp.ge.s32.totalorder %v1060, 0
    %vm1062 = vcmp.lt.s32.totalorder %v1060, 256
    %vm1063 = vmand %vm1061, %vm1062
    %1064 = vst.msk [vmem:[#allocation3] sm:$0x3] %vm1063, %v1058
    // Predicated region
    $region38: #{drug_synergy_forward.1} parent=1 // pred_check
      _
    $region39: #{drug_synergy_forward.1} parent=1 // pred_check_branch
      %1066 = sbr.rel (0) target = $region41
    $region40: #{drug_synergy_forward.1} parent=1 // pred_region
      %1068 = vsyncadd [#allocation4], 0
      %s1070 = sshll.u32 [#allocation3], 4
      %s1071 = int_to_ptr.vmem [resolvable:$true] %s1070
      %s1072 = sshll.u32 %s9, 4
      %s1073 = int_to_ptr.hbm [resolvable:$true] %s1072
      %1075 = dma.vmem_to_hbm [thread:$0]  %s1071, 32, %s1073, [#allocation4]
    $region41: #{drug_synergy_forward.1} parent=1 // pred_fallthru
      _
    // Predicated region
    $region42: #{drug_synergy_forward.1} parent=1 // pred_check
      _
    $region43: #{drug_synergy_forward.1} parent=1 // pred_check_branch
      %1077 = sbr.rel (0) target = $region45
    $region44: #{drug_synergy_forward.1} parent=1 // pred_region
      %1079 = dma.done [#allocation4], 32
    $region45: #{drug_synergy_forward.1} parent=1 // pred_fallthru
      _
    %1080 = vsyncpa [#allocation4], 1

</llo_original>
